<compile_context>
chip_gen: v7x
topology: tpu7x:2x2x1
jax: 0.10.0
libtpu: 0.0.40
codegen_flags: <defaults>
</compile_context>

<pallas_src>
import functools
import math

import numpy as np

import jax
import jax.numpy as jnp
from jax import lax
from jax.experimental import pallas as pl
from jax.experimental.pallas import tpu as pltpu

DEFAULT_MARGIN = 0.5
PAIRWISE_EPS = 1e-6            # torch.nn.functional.pairwise_distance default eps
LANES = 128
SUBLANE_ALIGN = 32             # safe sublane multiple for f32 / bf16 blocks
MAX_PACKED_COLS = 1024         # cap on packed row width (keeps seg matrix & MXU cost tiny)
MIB = 1024 * 1024


def _round_up(x, m):
    return (x + m - 1) // m * m


def _num_tensorcores():
    """TensorCores per JAX device: 2 on megacore (v4/v5p) and v7x-class, else 1."""
    try:
        dev = jax.devices()[0]
        if dev.platform != "tpu":
            return 1
        kind = dev.device_kind.lower()
    except Exception:
        return 1
    if "v4" in kind or "v5p" in kind or "7" in kind:
        return 2
    return 1


def _tpu_budget():
    """(per-block f32-equivalent byte budget, scoped VMEM limit) sized to the chip."""
    cap = None
    try:
        cap = getattr(pltpu.get_tpu_info(), "vmem_capacity_bytes", None)
    except Exception:
        cap = None
    if cap is None:
        try:
            kind = jax.devices()[0].device_kind.lower()
            cap = 64 * MIB if "7" in kind else 128 * MIB
        except Exception:
            cap = 64 * MIB                       # conservative default
    if cap >= 96 * MIB:                          # v5e / v6e: 128 MiB VMEM
        return 4 * MIB, 64 * MIB
    return 2 * MIB, 40 * MIB                     # v7x-class: 64 MiB VMEM per TC


def _choose_group(batch, feat, max_cols=MAX_PACKED_COLS, min_rows=8):
    """Largest G with G | batch, batch//G >= min_rows, G*feat % 128 == 0, G*feat <= max_cols."""
    g_align = LANES // math.gcd(feat, LANES)     # smallest G making rows lane-aligned
    best, g = 1, g_align
    while g * feat <= max_cols and g <= LANES:
        if batch % g == 0 and batch // g >= min_rows:
            best = g
        g += g_align
    return best


def _contrastive_kernel(x1_ref, x2_ref, lab_ref, seg_ref, out_ref, acc_ref, *,
                        margin, group, tile_r, tiles_per_core, n_valid):
    """Grid = (num_cores, tiles_per_core). Per-core partial loss sum in out_ref."""
    c = pl.program_id(0)
    i = pl.program_id(1)

    @pl.when(i == 0)
    def _init():
        acc_ref[...] = jnp.zeros_like(acc_ref)

    # Stream native dtype from HBM, upcast on load.
    x1 = x1_ref[...].astype(jnp.float32)          # (tile_r, group*feat)
    x2 = x2_ref[...].astype(jnp.float32)
    lab = lab_ref[...]                            # (tile_r, group) f32

    # F.pairwise_distance adds eps to the difference before the norm.
    diff = (x1 - x2) + PAIRWISE_EPS
    sq = diff * diff

    if group == 1:
        # Plain layout: reduce the feature axis on the XLU.
        d2 = jnp.sum(sq, axis=-1, keepdims=True)                       # (tile_r, 1)
    else:
        # Lane-packed layout: segmented sum via a resident 0/1 matrix on the idle MXU.
        # precision=HIGHEST keeps the f32 squared differences exact.
        d2 = jnp.dot(sq, seg_ref[...],
                     preferred_element_type=jnp.float32,
                     precision=lax.Precision.HIGHEST)                  # (tile_r, group)

    d = jnp.sqrt(d2)
    hinge = jnp.maximum(margin - d, 0.0)
    per_sample = (1.0 - lab) * d2 + lab * (hinge * hinge)              # (tile_r, group)

    tile_samples = tile_r * group
    first = (c * tiles_per_core + i) * tile_samples                    # first sample index

    # Interior tiles: one cheap VPU add into the resident accumulator.
    @pl.when(first + tile_samples <= n_valid)
    def _full_tile():
        acc_ref[...] += per_sample

    # Boundary (or clamped duplicate) tiles only: mask padded / out-of-range samples.
    @pl.when(first + tile_samples > n_valid)
    def _boundary_tile():
        r = lax.broadcasted_iota(jnp.int32, per_sample.shape, 0)
        g = lax.broadcasted_iota(jnp.int32, per_sample.shape, 1)
        idx = first + r * group + g
        acc_ref[...] += jnp.where(idx < n_valid, per_sample, 0.0)

    # Single tree-reduction + store per core, not per grid step.
    @pl.when(i == tiles_per_core - 1)
    def _flush():
        out_ref[...] = jnp.broadcast_to(jnp.sum(acc_ref[...]), out_ref.shape)


def contrastive_loss(output1, output2, label, *, margin=DEFAULT_MARGIN, block_bytes=None):
    """Pallas TPU forward pass of ContrastiveLoss (label: 1 = negative, 0 = positive)."""
    B, D = output1.shape
    assert output2.shape == (B, D), (output1.shape, output2.shape)
    assert label.size == B, (label.shape, B)

    num_cores = _num_tensorcores()
    auto_block, vmem_limit = _tpu_budget()
    if block_bytes is None:
        block_bytes = auto_block

    # Lane packing: G samples per row (row width a multiple of 128 lanes when G > 1).
    G = _choose_group(B, D)
    packed_cols = G * D
    R = B // G                                    # packed rows (exact: G divides B)

    # Pure metadata reshapes of contiguous row-major data -> no HBM copies, no padding.
    x1p = output1.reshape(R, packed_cols)
    x2p = output2.reshape(R, packed_cols)
    labp = label.astype(jnp.float32).reshape(-1).reshape(R, G)

    if G > 1:
        seg_np = np.zeros((packed_cols, G), np.float32)
        for g in range(G):
            seg_np[g * D:(g + 1) * D, g] = 1.0
        seg = jnp.asarray(seg_np)                 # resident 0/1 segment-sum matrix
    else:
        seg = jnp.zeros((1, 1), jnp.float32)      # unused placeholder

    # VMEM-aware tile size (rows of packed samples).
    cols_pad = _round_up(packed_cols, LANES)      # lane footprint per row in VMEM
    tile_cap = max(SUBLANE_ALIGN,
                   (block_bytes // (cols_pad * 4)) // SUBLANE_ALIGN * SUBLANE_ALIGN)
    tile_r = min(tile_cap, _round_up(pl.cdiv(R, num_cores), SUBLANE_ALIGN))
    if tile_r >= R:
        tile_r = R                                # single block == full leading dim (legal)
    total_blocks = pl.cdiv(R, tile_r)
    tiles_per_core = pl.cdiv(total_blocks, num_cores)
    last_block = total_blocks - 1

    def blk(c, i):
        # Clamp: any excess grid step re-reads the last block; its samples are masked.
        return (jnp.minimum(c * tiles_per_core + i, last_block), 0)

    kernel = functools.partial(
        _contrastive_kernel,
        margin=float(margin), group=G, tile_r=tile_r,
        tiles_per_core=tiles_per_core, n_valid=B)

    itemsize = jnp.dtype(output1.dtype).itemsize
    cost = pl.CostEstimate(
        flops=int(6 * B * D + 2 * B * D * G + 12 * B),
        transcendentals=int(B),
        bytes_accessed=int(2 * B * D * itemsize + 4 * B + 4 * seg.size + 4 * num_cores))

    partials = pl.pallas_call(
        kernel,
        out_shape=jax.ShapeDtypeStruct((num_cores, 1, 1), jnp.float32),
        grid_spec=pltpu.PrefetchScalarGridSpec(
            num_scalar_prefetch=0,
            grid=(num_cores, tiles_per_core),
            in_specs=[
                pl.BlockSpec((tile_r, packed_cols), blk),
                pl.BlockSpec((tile_r, packed_cols), blk),
                pl.BlockSpec((tile_r, G), blk),
                pl.BlockSpec(seg.shape, lambda c, i: (0, 0)),   # resident, loaded once
            ],
            out_specs=pl.BlockSpec((1, 1, 1), lambda c, i: (c, 0, 0)),
            scratch_shapes=[pltpu.VMEM((tile_r, G), jnp.float32)],
        ),
        compiler_params=pltpu.CompilerParams(
            dimension_semantics=("parallel", "arbitrary"),
            vmem_limit_bytes=vmem_limit,
        ),
        cost_estimate=cost,
    )(x1p, x2p, labp, seg)

    # Sum per-core partials, divide by the true batch size once (exact mean).
    return jnp.sum(partials) / jnp.float32(B)


def contrastive_loss_ref(output1, output2, label, margin=DEFAULT_MARGIN):
    """Pure-JAX reference matching the PyTorch module."""
    x1 = output1.astype(jnp.float32)
    x2 = output2.astype(jnp.float32)
    diff = x1 - x2 + PAIRWISE_EPS
    d = jnp.sqrt(jnp.sum(diff * diff, axis=-1))
    label = label.astype(jnp.float32).reshape(-1)
    loss = (1.0 - label) * d ** 2 + label * jnp.maximum(margin - d, 0.0) ** 2
    return jnp.mean(loss)


if __name__ == "__main__":
    key = jax.random.PRNGKey(0)
    keys = jax.random.split(key, 15)

    def check(x1, x2, lab, margin, rtol, atol, **kw):
        got = contrastive_loss(x1, x2, lab, margin=margin, **kw)
        jax.block_until_ready(got)
        want = contrastive_loss_ref(x1, x2, lab, margin=margin)
        assert jnp.allclose(got, want, rtol=rtol, atol=atol), (got, want)

    # Case 1: tiny f32 batch, D=32 -> unpacked single block (sanity).
    x1 = jax.random.normal(keys[0], (8, 32), dtype=jnp.float32)
    x2 = jax.random.normal(keys[1], (8, 32), dtype=jnp.float32)
    l1 = jax.random.bernoulli(keys[2], p=0.5, shape=(8,)).astype(jnp.float32)
    check(x1, x2, l1, DEFAULT_MARGIN, 1e-5, 1e-6)

    # Case 2: ragged bf16 batch, D=48 -> G=1 fallback, boundary mask, in-kernel upcast.
    a1 = jax.random.normal(keys[3], (37, 48), dtype=jnp.bfloat16)
    a2 = jax.random.normal(keys[4], (37, 48), dtype=jnp.bfloat16)
    l2 = jax.random.bernoulli(keys[5], p=0.5, shape=(37,)).astype(jnp.float32)
    check(a1, a2, l2, 0.75, 1e-4, 1e-5)

    # Case 3: f32, D=128 -> lane-packed path (G=8), MXU segment-sum at HIGHEST precision.
    b1 = jax.random.normal(keys[6], (64, 128), dtype=jnp.float32)
    b2 = jax.random.normal(keys[7], (64, 128), dtype=jnp.float32)
    l3 = jax.random.bernoulli(keys[8], p=0.5, shape=(64,)).astype(jnp.float32)
    check(b1, b2, l3, DEFAULT_MARGIN, 1e-5, 1e-6)

    # Case 4: forced tiny blocks -> multi-step resident accumulator + ragged boundary tile.
    c1 = jax.random.normal(keys[9], (250, 40), dtype=jnp.float32)
    c2 = jax.random.normal(keys[10], (250, 40), dtype=jnp.float32)
    l4 = jax.random.bernoulli(keys[11], p=0.5, shape=(250,)).astype(jnp.float32)
    check(c1, c2, l4, DEFAULT_MARGIN, 1e-5, 1e-6, block_bytes=8192)

    # Case 5: small-D f32 batch large enough to pack densely (G=32, 1024-lane rows).
    d1 = jax.random.normal(keys[12], (256, 32), dtype=jnp.float32)
    d2 = jax.random.normal(keys[13], (256, 32), dtype=jnp.float32)
    l5 = jax.random.bernoulli(keys[14], p=0.5, shape=(256,)).astype(jnp.float32)
    check(d1, d2, l5, DEFAULT_MARGIN, 1e-5, 1e-6)

    print("KERNEL_OK")
</pallas_src>

<mosaic_0001>
module attributes {stable_mosaic.version = 11 : i64} {
  func.func @_contrastive_kernel(%arg0: i32, %arg1: i32, %arg2: memref<8x32xf32, #tpu.memory_space<vmem>>, %arg3: memref<8x32xf32, #tpu.memory_space<vmem>>, %arg4: memref<8x1xf32, #tpu.memory_space<vmem>>, %arg5: memref<1x1xf32, #tpu.memory_space<vmem>>, %arg6: memref<1x1x1xf32, #tpu.memory_space<vmem>>, %arg7: memref<8x1xf32, #tpu.memory_space<vmem>>) attributes {dimension_semantics = [#tpu.dimension_semantics<parallel>, #tpu.dimension_semantics<arbitrary>], iteration_bounds = array<i64: 1, 1>, scalar_prefetch = 0 : i64, scratch_operands = 1 : i64, tpu.core_type = #tpu.core_type<tc>, window_params = [{transform_indices = @transform_0, window_bounds = array<i64: 8, 32>}, {transform_indices = @transform_1, window_bounds = array<i64: 8, 32>}, {transform_indices = @transform_2, window_bounds = array<i64: 8, 1>}, {pipeline_mode = #tpu.pipeline_mode<synchronous>, transform_indices = @transform_3, window_bounds = array<i64: 1, 1>}, {transform_indices = @transform_4, window_bounds = array<i64: 1, 1, 1>}]} {
    %c0_i32 = arith.constant 0 : i32
    %0 = arith.cmpi eq, %arg1, %c0_i32 : i32
    %1 = arith.extui %0 : i1 to i32
    %c0_i32_0 = arith.constant 0 : i32
    %2 = arith.cmpi ne, %1, %c0_i32_0 : i32
    scf.if %2 {
      %cst_18 = arith.constant 0.000000e+00 : f32
      %37 = vector.broadcast %cst_18 : f32 to vector<8x1xf32>
      %c0_19 = arith.constant 0 : index
      %c0_20 = arith.constant 0 : index
      %38 = vector.load %arg7[%c0_19, %c0_20] : memref<8x1xf32, #tpu.memory_space<vmem>>, vector<8x1xf32>
      tpu.vector_store %arg7[%c0_19, %c0_20], %37 {strides = array<i32>} : memref<8x1xf32, #tpu.memory_space<vmem>>, vector<8x1xf32>,
    } else {
    }
    %c0 = arith.constant 0 : index
    %c0_1 = arith.constant 0 : index
    %3 = vector.load %arg2[%c0, %c0_1] : memref<8x32xf32, #tpu.memory_space<vmem>>, vector<8x32xf32>
    %c0_2 = arith.constant 0 : index
    %c0_3 = arith.constant 0 : index
    %4 = vector.load %arg3[%c0_2, %c0_3] : memref<8x32xf32, #tpu.memory_space<vmem>>, vector<8x32xf32>
    %c0_4 = arith.constant 0 : index
    %c0_5 = arith.constant 0 : index
    %5 = vector.load %arg4[%c0_4, %c0_5] : memref<8x1xf32, #tpu.memory_space<vmem>>, vector<8x1xf32>
    %6 = arith.subf %3, %4 : vector<8x32xf32>
    %cst = arith.constant 9.99999997E-7 : f32
    %7 = vector.broadcast %cst : f32 to vector<8x32xf32>
    %8 = arith.addf %6, %7 : vector<8x32xf32>
    %9 = arith.mulf %8, %8 : vector<8x32xf32>
    %cst_6 = arith.constant dense<0.000000e+00> : vector<8xf32>
    %10 = vector.multi_reduction <add>, %9, %cst_6 [1] : vector<8x32xf32> to vector<8xf32>
    %11 = vector.shape_cast %10 : vector<8xf32> to vector<8x1xf32>
    %12 = math.sqrt %11 : vector<8x1xf32>
    %cst_7 = arith.constant 5.000000e-01 : f32
    %13 = vector.broadcast %cst_7 : f32 to vector<8x1xf32>
    %14 = arith.subf %13, %12 : vector<8x1xf32>
    %cst_8 = arith.constant 0.000000e+00 : f32
    %15 = vector.broadcast %cst_8 : f32 to vector<8x1xf32>
    %16 = arith.maximumf %14, %15 : vector<8x1xf32>
    %cst_9 = arith.constant 1.000000e+00 : f32
    %17 = vector.broadcast %cst_9 : f32 to vector<8x1xf32>
    %18 = arith.subf %17, %5 : vector<8x1xf32>
    %19 = arith.mulf %18, %11 : vector<8x1xf32>
    %20 = arith.mulf %16, %16 : vector<8x1xf32>
    %21 = arith.mulf %5, %20 : vector<8x1xf32>
    %22 = arith.addf %19, %21 : vector<8x1xf32>
    %c1_i32 = arith.constant 1 : i32
    %23 = arith.muli %arg0, %c1_i32 : i32
    %24 = arith.addi %23, %arg1 : i32
    %c8_i32 = arith.constant 8 : i32
    %25 = arith.muli %24, %c8_i32 : i32
    %c8_i32_10 = arith.constant 8 : i32
    %26 = arith.addi %25, %c8_i32_10 : i32
    %c8_i32_11 = arith.constant 8 : i32
    %27 = arith.cmpi sle, %26, %c8_i32_11 : i32
    %28 = arith.extui %27 : i1 to i32
    %c0_i32_12 = arith.constant 0 : i32
    %29 = arith.cmpi ne, %28, %c0_i32_12 : i32
    scf.if %29 {
      %c0_18 = arith.constant 0 : index
      %c0_19 = arith.constant 0 : index
      %37 = vector.load %arg7[%c0_18, %c0_19] : memref<8x1xf32, #tpu.memory_space<vmem>>, vector<8x1xf32>
      %38 = arith.addf %37, %22 : vector<8x1xf32>
      %c0_20 = arith.constant 0 : index
      %c0_21 = arith.constant 0 : index
      %39 = vector.load %arg7[%c0_20, %c0_21] : memref<8x1xf32, #tpu.memory_space<vmem>>, vector<8x1xf32>
      tpu.vector_store %arg7[%c0_20, %c0_21], %38 {strides = array<i32>} : memref<8x1xf32, #tpu.memory_space<vmem>>, vector<8x1xf32>,
    } else {
    }
    %c8_i32_13 = arith.constant 8 : i32
    %30 = arith.addi %25, %c8_i32_13 : i32
    %c8_i32_14 = arith.constant 8 : i32
    %31 = arith.cmpi sgt, %30, %c8_i32_14 : i32
    %32 = arith.extui %31 : i1 to i32
    %c0_i32_15 = arith.constant 0 : i32
    %33 = arith.cmpi ne, %32, %c0_i32_15 : i32
    scf.if %33 {
      %37 = tpu.iota {dimensions = array<i32: 0>} : vector<8x1xi32>
      %38 = tpu.iota {dimensions = array<i32: 1>} : vector<8x1xi32>
      %c1_i32_18 = arith.constant 1 : i32
      %39 = vector.broadcast %c1_i32_18 : i32 to vector<8x1xi32>
      %40 = arith.muli %37, %39 : vector<8x1xi32>
      %41 = vector.broadcast %25 : i32 to vector<8x1xi32>
      %42 = arith.addi %41, %40 : vector<8x1xi32>
      %43 = arith.addi %42, %38 : vector<8x1xi32>
      %c0_19 = arith.constant 0 : index
      %c0_20 = arith.constant 0 : index
      %44 = vector.load %arg7[%c0_19, %c0_20] : memref<8x1xf32, #tpu.memory_space<vmem>>, vector<8x1xf32>
      %c8_i32_21 = arith.constant 8 : i32
      %45 = vector.broadcast %c8_i32_21 : i32 to vector<8x1xi32>
      %46 = arith.cmpi slt, %43, %45 : vector<8x1xi32>
      %cst_22 = arith.constant 0.000000e+00 : f32
      %47 = vector.broadcast %cst_22 : f32 to vector<8x1xf32>
      %48 = arith.select %46, %22, %47 : vector<8x1xi1>, vector<8x1xf32>
      %49 = arith.addf %44, %48 : vector<8x1xf32>
      %c0_23 = arith.constant 0 : index
      %c0_24 = arith.constant 0 : index
      %50 = vector.load %arg7[%c0_23, %c0_24] : memref<8x1xf32, #tpu.memory_space<vmem>>, vector<8x1xf32>
      tpu.vector_store %arg7[%c0_23, %c0_24], %49 {strides = array<i32>} : memref<8x1xf32, #tpu.memory_space<vmem>>, vector<8x1xf32>,
    } else {
    }
    %c0_i32_16 = arith.constant 0 : i32
    %34 = arith.cmpi eq, %arg1, %c0_i32_16 : i32
    %35 = arith.extui %34 : i1 to i32
    %c0_i32_17 = arith.constant 0 : i32
    %36 = arith.cmpi ne, %35, %c0_i32_17 : i32
    scf.if %36 {
      %c0_18 = arith.constant 0 : index
      %c0_19 = arith.constant 0 : index
      %37 = vector.load %arg7[%c0_18, %c0_19] : memref<8x1xf32, #tpu.memory_space<vmem>>, vector<8x1xf32>
      %38 = vector.shape_cast %37 : vector<8x1xf32> to vector<1x8x1xf32>
      %cst_20 = arith.constant dense<0.000000e+00> : vector<1xf32>
      %39 = vector.multi_reduction <add>, %38, %cst_20 [1, 2] : vector<1x8x1xf32> to vector<1xf32>
      %40 = vector.shape_cast %39 : vector<1xf32> to vector<1x1x1xf32>
      %41 = vector.extract %40[0, 0, 0] : f32 from vector<1x1x1xf32>
      %42 = vector.broadcast %41 : f32 to vector<1x1x1xf32>
      %c0_21 = arith.constant 0 : index
      %c0_22 = arith.constant 0 : index
      %c0_23 = arith.constant 0 : index
      %43 = vector.load %arg6[%c0_21, %c0_22, %c0_23] : memref<1x1x1xf32, #tpu.memory_space<vmem>>, vector<1x1x1xf32>
      tpu.vector_store %arg6[%c0_21, %c0_22, %c0_23], %42 {strides = array<i32>} : memref<1x1x1xf32, #tpu.memory_space<vmem>>, vector<1x1x1xf32>,
    } else {
    }
    return
  }
  func.func @transform_0(%arg0: i32, %arg1: i32) -> (i32, i32) {
    %c1_i32 = arith.constant 1 : i32
    %0 = arith.muli %arg0, %c1_i32 : i32
    %1 = arith.addi %0, %arg1 : i32
    %c0_i32 = arith.constant 0 : i32
    %2 = arith.minsi %1, %c0_i32 : i32
    %c0_i32_0 = arith.constant 0 : i32
    %c0_i32_1 = arith.constant 0 : i32
    return %2, %c0_i32_0 : i32, i32
  }
  func.func @transform_1(%arg0: i32, %arg1: i32) -> (i32, i32) {
    %c1_i32 = arith.constant 1 : i32
    %0 = arith.muli %arg0, %c1_i32 : i32
    %1 = arith.addi %0, %arg1 : i32
    %c0_i32 = arith.constant 0 : i32
    %2 = arith.minsi %1, %c0_i32 : i32
    %c0_i32_0 = arith.constant 0 : i32
    %c0_i32_1 = arith.constant 0 : i32
    return %2, %c0_i32_0 : i32, i32
  }
  func.func @transform_2(%arg0: i32, %arg1: i32) -> (i32, i32) {
    %c1_i32 = arith.constant 1 : i32
    %0 = arith.muli %arg0, %c1_i32 : i32
    %1 = arith.addi %0, %arg1 : i32
    %c0_i32 = arith.constant 0 : i32
    %2 = arith.minsi %1, %c0_i32 : i32
    %c0_i32_0 = arith.constant 0 : i32
    %c0_i32_1 = arith.constant 0 : i32
    return %2, %c0_i32_0 : i32, i32
  }
  func.func @transform_3(%arg0: i32, %arg1: i32) -> (i32, i32) {
    %c0_i32 = arith.constant 0 : i32
    %c0_i32_0 = arith.constant 0 : i32
    %c0_i32_1 = arith.constant 0 : i32
    return %c0_i32, %c0_i32_0 : i32, i32
  }
  func.func @transform_4(%arg0: i32, %arg1: i32) -> (i32, i32, i32) {
    %c0_i32 = arith.constant 0 : i32
    %c0_i32_0 = arith.constant 0 : i32
    %c0_i32_1 = arith.constant 0 : i32
    return %arg0, %c0_i32, %c0_i32_0 : i32, i32, i32
  }
}

</mosaic_0001>

<llo_original>
// kernel: tpu_custom_call.1
$region0: #{tpu_custom_call.1}
  #allocation0 [shape = 'u32[]', space=smem, size = 0x4, offset = 0x4, fixed_abs, tag = 'smem constant byte address 0x4 - core index']
  #allocation1 [shape = 'u32[144,128]{1,0:T(1,128)}', space=vmem, size = 0x12000, scoped, tag = 'internal scratch']
  #allocation2 [shape = 'f32[8,1]{1,0:T(8,128)}', space=vmem, size = 0x1000, scoped, tag = 'scratch operand']
  #allocation3 [shape = 'f32[1,1]{1,0:T(1,128)S(1)}', space=vmem, size = 0x200, scoped, tag = 'scoped memory for tpu_custom_call.1']
  %s0 = inlined_call_operand.hbm [shape: f32[8,32], index: 0, kind: input, shape index: {}]
  %s1 = inlined_call_operand.hbm [shape: f32[8,32], index: 1, kind: input, shape index: {}]
  %s2 = inlined_call_operand.hbm [shape: f32[8,1], index: 2, kind: input, shape index: {}]
  %s3 = inlined_call_operand.<no memory space> [shape: f32[1,1], index: 3, kind: input, shape index: {}]
  %s4 = inlined_call_operand.hbm [shape: f32[1,1,1], index: 4, kind: output, shape index: {}]
  %s5 = sld [smem:[#allocation0]]
  $region54: #{tpu_custom_call.1} parent=0
    _
  %s7 = ssub.s32 1, %s5
  %s8 = scalar_select 0, %s7, %s5
  %v9 = vstv %s3
  %10 = vst [vmem:[#allocation3] sm:$0x1] %v9
  $region1: #{tpu_custom_call.1} parent=0
    #allocation4 [shape = 'u8[4096]{0}', space=vmem, size = 0x1000, scoped, tag = 'input window, operand 0, single buffered']
    #allocation5 [shape = 's32[1]{0}', space=sflag, size = 0x4, scoped, tag = 'scoped memory for tpu_custom_call.1']
    #allocation6 [shape = 's32[1]{0}', space=sflag, size = 0x4, scoped, tag = 'scoped memory for tpu_custom_call.1']
    #allocation7 [shape = 'u8[4096]{0}', space=vmem, size = 0x1000, scoped, tag = 'input window, operand 1, single buffered']
    #allocation8 [shape = 's32[1]{0}', space=sflag, size = 0x4, scoped, tag = 'scoped memory for tpu_custom_call.1']
    #allocation9 [shape = 'u8[4096]{0}', space=vmem, size = 0x1000, scoped, tag = 'input window, operand 2, single buffered']
    #allocation10 [shape = 'u8[512]{0}', space=vmem, size = 0x400, scoped, tag = 'output window, operand 0, single buffered']
    %11 = vsyncpa [#allocation5], 0
    %12 = vsyncpa [#allocation8], 0
    %13 = vsyncpa [#allocation6], 0
    // Predicated region
    $region2: #{tpu_custom_call.1} parent=1 // pred_check
      _
    $region3: #{tpu_custom_call.1} parent=1 // pred_check_branch
      %15 = sbr.rel (0) target = $region5
    $region4: #{tpu_custom_call.1} parent=1 // pred_region
      %s16 = sadd.s32 0, 0
      %p17 = scmp.lt.s32.totalorder %s16, 0
      %s18 = scalar_select %p17, %s16, 0
      %s20 = ssub.s32 128, 128
      %21 = vsyncadd [#allocation5], %s20
      %s22 = smul.addr %s18, 128
      %s23 = scalar_lea.hbm %s0, %s22
      %s25 = sshll.u32 [#allocation4], 4
      %s26 = int_to_ptr.vmem [resolvable:$true] %s25
      %28 = dma.hbm_to_vmem [thread:$0]  %s23, 128, %s26, [#allocation5]
    $region5: #{tpu_custom_call.1} parent=1 // pred_fallthru
      _
    // Predicated region
    $region6: #{tpu_custom_call.1} parent=1 // pred_check
      _
    $region7: #{tpu_custom_call.1} parent=1 // pred_check_branch
      %30 = sbr.rel (0) target = $region9
    $region8: #{tpu_custom_call.1} parent=1 // pred_region
      %s31 = sadd.s32 0, 0
      %p32 = scmp.lt.s32.totalorder %s31, 0
      %s33 = scalar_select %p32, %s31, 0
      %s35 = ssub.s32 128, 128
      %36 = vsyncadd [#allocation8], %s35
      %s37 = smul.addr %s33, 128
      %s38 = scalar_lea.hbm %s1, %s37
      %s40 = sshll.u32 [#allocation7], 4
      %s41 = int_to_ptr.vmem [resolvable:$true] %s40
      %43 = dma.hbm_to_vmem [thread:$0]  %s38, 128, %s41, [#allocation8]
    $region9: #{tpu_custom_call.1} parent=1 // pred_fallthru
      _
    // Predicated region
    $region10: #{tpu_custom_call.1} parent=1 // pred_check
      _
    $region11: #{tpu_custom_call.1} parent=1 // pred_check_branch
      %45 = sbr.rel (0) target = $region13
    $region12: #{tpu_custom_call.1} parent=1 // pred_region
      %s46 = sadd.s32 0, 0
      %p47 = scmp.lt.s32.totalorder %s46, 0
      %s48 = scalar_select %p47, %s46, 0
      %s50 = ssub.s32 128, 128
      %51 = vsyncadd [#allocation8], %s50
      %s52 = smul.addr %s48, 128
      %s53 = scalar_lea.hbm %s2, %s52
      %s55 = sshll.u32 [#allocation9], 4
      %s56 = int_to_ptr.vmem [resolvable:$true] %s55
      %58 = dma.hbm_to_vmem [thread:$0]  %s53, 128, %s56, [#allocation8]
    $region13: #{tpu_custom_call.1} parent=1 // pred_fallthru
      _
    // Predicated region
    $region14: #{tpu_custom_call.1} parent=1 // pred_check
      _
    $region15: #{tpu_custom_call.1} parent=1 // pred_check_branch
      %60 = sbr.rel (0) target = $region17
    $region16: #{tpu_custom_call.1} parent=1 // pred_region
      _
    $region17: #{tpu_custom_call.1} parent=1 // pred_fallthru
      _
    // Predicated region
    $region18: #{tpu_custom_call.1} parent=1 // pred_check
      _
    $region19: #{tpu_custom_call.1} parent=1 // pred_check_branch
      %62 = sbr.rel (0) target = $region21
    $region20: #{tpu_custom_call.1} parent=1 // pred_region
      %63 = dma.done [#allocation5], 128
    $region21: #{tpu_custom_call.1} parent=1 // pred_fallthru
      _
    // Predicated region
    $region22: #{tpu_custom_call.1} parent=1 // pred_check
      _
    $region23: #{tpu_custom_call.1} parent=1 // pred_check_branch
      %65 = sbr.rel (0) target = $region25
    $region24: #{tpu_custom_call.1} parent=1 // pred_region
      %66 = dma.done [#allocation8], 128
    $region25: #{tpu_custom_call.1} parent=1 // pred_fallthru
      _
    // Predicated region
    $region26: #{tpu_custom_call.1} parent=1 // pred_check
      _
    $region27: #{tpu_custom_call.1} parent=1 // pred_check_branch
      %68 = sbr.rel (0) target = $region29
    $region28: #{tpu_custom_call.1} parent=1 // pred_region
      %69 = dma.done [#allocation8], 128
    $region29: #{tpu_custom_call.1} parent=1 // pred_fallthru
      _
    %s70 = sadd.s32 0, 0
    %p71 = scmp.lt.s32.totalorder %s70, 0
    %s72 = scalar_select %p71, %s70, 0
    %s73 = sadd.s32 0, 0
    %p74 = scmp.lt.s32.totalorder %s73, 0
    %s75 = scalar_select %p74, %s73, 0
    %s76 = sadd.s32 0, 0
    %p77 = scmp.lt.s32.totalorder %s76, 0
    %s78 = scalar_select %p77, %s76, 0
    %p79 = scmp.eq.s32.totalorder 0, 0
    // Predicated region
    $region30: #{tpu_custom_call.1} parent=1 // pred_check
      %p80 = pneg %p79
    $region31: #{tpu_custom_call.1} parent=1 // pred_check_branch
      %82 = sbr.rel (%p80) target = $region33
    $region32: #{tpu_custom_call.1} parent=1 // pred_region
      %vm83 = vcmask 7168
      %84 = vst.msk [vmem:[#allocation2] sm:$0xff] %vm83, 0.0
    $region33: #{tpu_custom_call.1} parent=1 // pred_fallthru
      _
    %v85 = vld [vmem:[#allocation4] sm:$0xff]
    %v86 = vld [vmem:[#allocation7] sm:$0xff]
    %v87 = vld [vmem:[#allocation9] sm:$0xff]
    %v88 = vsub.f32 %v85, %v86
    %v89 = vadd.f32 %v88, 1e-06
    %v90 = vmul.f32 %v89, %v89
    %vm91 = vcmask 261120
    %v92 = vsel %vm91, %v90, 0.0
    %93 = vadd.xlane.f32.xlu0 %v92
    %v94 = vpop.xlane.xlu0 %93
    %v95 = vrsqrt.pop %v94
    %v96 = vmul.f32 %v94, %v95
    %vm97 = vcmp.eq.f32.partialorder %v94, inf
    %v98 = vsel %vm97, %v94, %v96
    %vm99 = vcmp.eq.f32.partialorder %v94, 0.0
    %v100 = vand.u32 %v94, 2147483648
    %v101 = vsel %vm99, %v100, %v98
    %v102 = vsub.f32 0.5, %v101
    %v103 = vmax.f32 %v102, 0.0
    %v104 = vsub.f32 1.0, %v87
    %v105 = vmul.f32 %v104, %v94
    %v106 = vmul.f32 %v103, %v103
    %v107 = vmul.f32 %v87, %v106
    %v108 = vadd.f32 %v105, %v107
    %s109 = sadd.s32 0, 0
    %s110 = smul.u32 %s109, 8
    %s111 = sadd.s32 %s110, 8
    %p112 = scmp.le.s32.totalorder %s111, 8
    // Predicated region
    $region34: #{tpu_custom_call.1} parent=1 // pred_check
      %p113 = pneg %p112
    $region35: #{tpu_custom_call.1} parent=1 // pred_check_branch
      %115 = sbr.rel (%p113) target = $region37
    $region36: #{tpu_custom_call.1} parent=1 // pred_region
      %v116 = vld [vmem:[#allocation2] sm:$0xff]
      %v117 = vadd.f32 %v116, %v108
      %vm118 = vcmask 7168
      %119 = vst.msk [vmem:[#allocation2] sm:$0xff] %vm118, %v117
    $region37: #{tpu_custom_call.1} parent=1 // pred_fallthru
      _
    %p120 = scmp.gt.s32.totalorder %s111, 8
    // Predicated region
    $region38: #{tpu_custom_call.1} parent=1 // pred_check
      %p121 = pneg %p120
    $region39: #{tpu_custom_call.1} parent=1 // pred_check_branch
      %123 = sbr.rel (%p121) target = $region41
    $region40: #{tpu_custom_call.1} parent=1 // pred_region
      %v124 = vlaneseq
      %v125 = vshrl.u32 %v124, 7
      %v126 = vlaneseq
      %v127 = vand.u32 %v126, 127
      %v128 = vstv %s110
      %v129 = vadd.s32 %v128, %v125
      %v130 = vadd.s32 %v129, %v127
      %v131 = vld [vmem:[#allocation2] sm:$0xff]
      %vm132 = vcmp.lt.s32.totalorder %v130, 8
      %v133 = vsel %vm132, %v108, 0.0
      %v134 = vadd.f32 %v131, %v133
      %vm135 = vcmask 7168
      %136 = vst.msk [vmem:[#allocation2] sm:$0xff] %vm135, %v134
    $region41: #{tpu_custom_call.1} parent=1 // pred_fallthru
      _
    // Predicated region
    $region42: #{tpu_custom_call.1} parent=1 // pred_check
      %p137 = pneg %p79
    $region43: #{tpu_custom_call.1} parent=1 // pred_check_branch
      %139 = sbr.rel (%p137) target = $region45
    $region44: #{tpu_custom_call.1} parent=1 // pred_region
      %v140 = vld [vmem:[#allocation2] sm:$0xff]
      %vm141 = vcmask 7168
      %v142 = vsel %vm141, %v140, 0.0
      %143 = vadd.xlane.f32.xlu0 %v142
      %v144 = vpop.xlane.xlu0 %143
      %v145 = vrot.slane %v144, 4
      %v146 = vadd.f32 %v144, %v145
      %v147 = vrot.slane %v146, 2
      %v148 = vadd.f32 %v146, %v147
      %v149 = vrot.slane %v148, 1
      %v150 = vadd.f32 %v148, %v149
      %s151 = vtos %v150
      %v152 = vstv %s151
      %vm153 = vcmask 0
      %154 = vst.msk [vmem:[#allocation10] sm:$0x1] %vm153, %v152
    $region45: #{tpu_custom_call.1} parent=1 // pred_fallthru
      _
    // Predicated region
    $region46: #{tpu_custom_call.1} parent=1 // pred_check
      _
    $region47: #{tpu_custom_call.1} parent=1 // pred_check_branch
      %156 = sbr.rel (0) target = $region49
    $region48: #{tpu_custom_call.1} parent=1 // pred_region
      %s158 = ssub.s32 16, 16
      %159 = vsyncadd [#allocation6], %s158
      %s161 = sshll.u32 [#allocation10], 4
      %s162 = int_to_ptr.vmem [resolvable:$true] %s161
      %164 = dma.vmem_to_hbm [thread:$0]  %s162, 16, %s4, [#allocation6]
    $region49: #{tpu_custom_call.1} parent=1 // pred_fallthru
      _
    // Predicated region
    $region50: #{tpu_custom_call.1} parent=1 // pred_check
      _
    $region51: #{tpu_custom_call.1} parent=1 // pred_check_branch
      %166 = sbr.rel (0) target = $region53
    $region52: #{tpu_custom_call.1} parent=1 // pred_region
      %167 = dma.done [#allocation6], 16
    $region53: #{tpu_custom_call.1} parent=1 // pred_fallthru
      _
    %168 = vsyncpa [#allocation5], 1
    %169 = vsyncpa [#allocation8], 1
    %170 = vsyncpa [#allocation6], 1

</llo_original>
